<compile_context>
chip_gen: v6e
topology: v6e:2x2x1
jax: 0.10.0
libtpu: 0.0.40
codegen_flags: <defaults>
</compile_context>

<pallas_src>
import functools

import jax
import jax.numpy as jnp
from jax.experimental import pallas as pl
from jax.experimental.pallas import tpu as pltpu


def _clamp_kernel(x_ref, o_ref, *, vmin, vmax, compute_dtype):
    # sigmoid -> EUP, scale/shift -> VPU; fully hidden under the HBM stream.
    x = x_ref[...].astype(compute_dtype)
    y = jax.nn.sigmoid(x) * (vmax - vmin) + vmin
    o_ref[...] = y.astype(o_ref.dtype)


def _clamp_jax(x, vmin, vmax):
    # Plain-JAX path: small tensors and ragged tails (XLA fuses this).
    return (jax.nn.sigmoid(x) * (vmax - vmin) + vmin).astype(x.dtype)


_SMALL_BYTES = 256 * 1024  # below this, pallas_call launch cost dominates


def _sublane_multiple(dtype):
    # f32 -> 8, bf16/f16 -> 16, int8/fp8 -> 32 (sub-32-bit packs along sublanes)
    itemsize = max(1, jnp.dtype(dtype).itemsize)
    return max(8, 8 * (4 // itemsize))


def _on_v5():
    try:
        return "v5" in jax.devices()[0].device_kind.lower()
    except Exception:
        return False


def clamp_forward(x, vmin, vmax, *,
                  target_block_bytes=4 * 1024 * 1024,
                  force_pallas=False):
    """sigmoid(x) * (vmax - vmin) + vmin, elementwise, via a Pallas TPU kernel."""
    orig_shape = x.shape
    orig_dtype = x.dtype
    n = x.size
    itemsize = jnp.dtype(orig_dtype).itemsize
    vmin = float(vmin)
    vmax = float(vmax)

    # --- Small-tensor fast path -------------------------------------------
    if n == 0 or (not force_pallas and n * itemsize < _SMALL_BYTES):
        return _clamp_jax(x, vmin, vmax)

    # --- Compute dtype ------------------------------------------------------
    # Native bf16 on v6e/v7x; v5 has no bf16 VPU/EUP datapath -> f32 compute.
    # Anything else (f16/int) computes in f32 and casts back (truncating cast
    # for int dtypes; only float inputs are expected from the module).
    if orig_dtype == jnp.dtype(jnp.float32):
        compute_dtype = jnp.float32
    elif orig_dtype == jnp.dtype(jnp.bfloat16):
        compute_dtype = jnp.float32 if _on_v5() else jnp.bfloat16
    else:
        compute_dtype = jnp.float32

    # --- Lane-dense layout --------------------------------------------------
    lane = 128
    for cand in (512, 256):
        if n % cand == 0 and n // cand >= 8:
            lane = cand
            break

    flat = x.reshape(-1)
    n_main = (n // lane) * lane
    if n_main == 0:
        return _clamp_jax(x, vmin, vmax)

    tail = flat[n_main:] if n_main != n else None   # ragged tail: < lane elems
    rows = n_main // lane
    x2d = flat[:n_main].reshape(rows, lane)

    # --- Block sizing ---------------------------------------------------------
    sub = _sublane_multiple(orig_dtype)
    if rows <= sub:
        tile_rows = rows                               # single full-extent block
    else:
        # ~target_block_bytes per block, rounded to the sublane multiple.
        tile_rows = max(sub, (target_block_bytes // (lane * itemsize)) // sub * sub)
        # Keep >= ~8 grid steps so each v7x TC gets >=4 blocks (and single-TC
        # v5e/v6e keep prefetch/compute/writeback overlapped).
        cap = -(-rows // 8)                            # ceil(rows / 8)
        cap = -(-cap // sub) * sub                     # round up to sublane mult
        tile_rows = min(tile_rows, cap)
        tile_rows = min(tile_rows, -(-rows // sub) * sub)

    grid = (pl.cdiv(rows, tile_rows),)                 # ragged last block is
                                                       # clipped (elementwise-safe)

    kernel = functools.partial(
        _clamp_kernel, vmin=vmin, vmax=vmax, compute_dtype=compute_dtype)

    # VMEM budget: in+out, double-buffered -> 4 * block_bytes <= 16 MiB at the
    # 4 MiB target; explicit 32 MiB limit leaves headroom on every generation
    # (v7x: 64 MiB physical, v5e/v6e: 128 MiB physical).
    out2d = pl.pallas_call(
        kernel,
        out_shape=jax.ShapeDtypeStruct((rows, lane), orig_dtype),
        grid_spec=pltpu.PrefetchScalarGridSpec(
            num_scalar_prefetch=0,
            grid=grid,
            in_specs=[pl.BlockSpec((tile_rows, lane), lambda i: (i, 0))],
            out_specs=pl.BlockSpec((tile_rows, lane), lambda i: (i, 0)),
        ),
        compiler_params=pltpu.CompilerParams(
            dimension_semantics=("parallel",),
            vmem_limit_bytes=32 * 1024 * 1024,
        ),
    )(x2d)

    out_flat = out2d.reshape(-1)
    if tail is not None:
        out_flat = jnp.concatenate([out_flat, _clamp_jax(tail, vmin, vmax)])
    return out_flat.reshape(orig_shape)


if __name__ == "__main__":
    clamp_min, clamp_max = -1.0, 2.0
    key = jax.random.PRNGKey(0)

    def ref_fn(x):
        return (jax.nn.sigmoid(x.astype(jnp.float32)) * (clamp_max - clamp_min)
                + clamp_min).astype(x.dtype)

    ok = True

    # 1) Module-sized input (2,4,16,16): small fast path AND forced
    #    single-block Pallas path.
    k1, k2, k3, k4 = jax.random.split(key, 4)
    x_small = jax.random.normal(k1, (2, 4, 16, 16), dtype=jnp.float32)
    out_fast = jax.block_until_ready(clamp_forward(x_small, clamp_min, clamp_max))
    out_pal = jax.block_until_ready(
        clamp_forward(x_small, clamp_min, clamp_max, force_pallas=True))
    r = ref_fn(x_small)
    ok &= out_fast.shape == x_small.shape and out_fast.dtype == x_small.dtype
    ok &= bool(jnp.allclose(out_fast, r, atol=1e-6, rtol=1e-6))
    ok &= bool(jnp.allclose(out_pal, r, atol=1e-6, rtol=1e-6))

    # 2) Multi-block pipelined path (8 MiB f32, lane=512, 8 grid steps).
    x_big = jax.random.normal(k2, (8, 64, 64, 64), dtype=jnp.float32)
    out_big = jax.block_until_ready(clamp_forward(x_big, clamp_min, clamp_max))
    ok &= bool(jnp.allclose(out_big, ref_fn(x_big), atol=1e-6, rtol=1e-6))

    # 3) Flat size not a multiple of 128: aligned prefix through the kernel,
    #    plain-JAX tail epilogue (no pad/slice round-trip).
    x_odd = jax.random.normal(k3, (257, 1031), dtype=jnp.float32)
    out_odd = jax.block_until_ready(clamp_forward(x_odd, clamp_min, clamp_max))
    ok &= out_odd.shape == x_odd.shape
    ok &= bool(jnp.allclose(out_odd, ref_fn(x_odd), atol=1e-6, rtol=1e-6))

    # 4) bf16 path (16-row sublane rounding; native bf16 compute on v6e/v7x).
    x_bf = jax.random.normal(k4, (4, 256, 384), dtype=jnp.bfloat16)
    out_bf = jax.block_until_ready(clamp_forward(x_bf, clamp_min, clamp_max))
    ok &= out_bf.dtype == jnp.bfloat16
    ok &= bool(jnp.allclose(out_bf.astype(jnp.float32),
                            ref_fn(x_bf).astype(jnp.float32),
                            atol=2e-2, rtol=2e-2))

    assert ok
    print("KERNEL_OK")
</pallas_src>

<mosaic_0001>
module attributes {stable_mosaic.version = 11 : i64} {
  func.func @_clamp_kernel(%arg0: i32, %arg1: memref<8x256xf32, #tpu.memory_space<vmem>>, %arg2: memref<8x256xf32, #tpu.memory_space<vmem>>) attributes {dimension_semantics = [#tpu.dimension_semantics<parallel>], iteration_bounds = array<i64: 1>, scalar_prefetch = 0 : i64, scratch_operands = 0 : i64, tpu.core_type = #tpu.core_type<tc>, window_params = [{transform_indices = @transform_0, window_bounds = array<i64: 8, 256>}, {transform_indices = @transform_1, window_bounds = array<i64: 8, 256>}]} {
    %c0 = arith.constant 0 : index
    %c0_0 = arith.constant 0 : index
    %0 = vector.load %arg1[%c0, %c0_0] : memref<8x256xf32, #tpu.memory_space<vmem>>, vector<8x256xf32>
    %1 = arith.negf %0 : vector<8x256xf32>
    %2 = math.exp %1 : vector<8x256xf32>
    %cst = arith.constant 1.000000e+00 : f32
    %3 = vector.broadcast %cst : f32 to vector<8x256xf32>
    %4 = arith.addf %3, %2 : vector<8x256xf32>
    %5 = arith.divf %3, %4 : vector<8x256xf32>
    %cst_1 = arith.constant 3.000000e+00 : f32
    %6 = vector.broadcast %cst_1 : f32 to vector<8x256xf32>
    %7 = arith.mulf %5, %6 : vector<8x256xf32>
    %cst_2 = arith.constant -1.000000e+00 : f32
    %8 = vector.broadcast %cst_2 : f32 to vector<8x256xf32>
    %9 = arith.addf %7, %8 : vector<8x256xf32>
    %c0_3 = arith.constant 0 : index
    %c0_4 = arith.constant 0 : index
    %10 = vector.load %arg2[%c0_3, %c0_4] : memref<8x256xf32, #tpu.memory_space<vmem>>, vector<8x256xf32>
    tpu.vector_store %arg2[%c0_3, %c0_4], %9 {strides = array<i32>} : memref<8x256xf32, #tpu.memory_space<vmem>>, vector<8x256xf32>,
    return
  }
  func.func @transform_0(%arg0: i32) -> (i32, i32) {
    %c0_i32 = arith.constant 0 : i32
    %c0_i32_0 = arith.constant 0 : i32
    return %arg0, %c0_i32 : i32, i32
  }
  func.func @transform_1(%arg0: i32) -> (i32, i32) {
    %c0_i32 = arith.constant 0 : i32
    %c0_i32_0 = arith.constant 0 : i32
    return %arg0, %c0_i32 : i32, i32
  }
}

</mosaic_0001>

<llo_original>
// kernel: tpu_custom_call.1
$region0: #{tpu_custom_call.1}
  #allocation0 [shape = 'u32[]', space=smem, size = 0x4, offset = 0x4, fixed_abs, tag = 'smem constant byte address 0x4 - core index']
  #allocation1 [shape = 'u32[144,128]{1,0:T(1,128)}', space=vmem, size = 0x12000, scoped, tag = 'internal scratch']
  %s0 = inlined_call_operand.hbm [shape: f32[8,256], index: 0, kind: input, shape index: {}]
  %s1 = inlined_call_operand.hbm [shape: f32[8,256], index: 1, kind: output, shape index: {}]
  %s2 = sld [smem:[#allocation0]]
  $region18: #{tpu_custom_call.1} parent=0
    _
  %s4 = ssub.s32 1, %s2
  %s5 = scalar_select 0, %s4, %s2
  $region1: #{tpu_custom_call.1} parent=0
    #allocation2 [shape = 'u8[8192]{0}', space=vmem, size = 0x2000, scoped, tag = 'input window, operand 0, single buffered']
    #allocation3 [shape = 's32[1]{0}', space=sflag, size = 0x4, scoped, tag = 'scoped memory for tpu_custom_call.1']
    #allocation4 [shape = 's32[1]{0}', space=sflag, size = 0x4, scoped, tag = 'scoped memory for tpu_custom_call.1']
    #allocation5 [shape = 'u8[8192]{0}', space=vmem, size = 0x2000, scoped, tag = 'output window, operand 0, single buffered']
    %6 = vsyncpa [#allocation3], 0
    %7 = vsyncpa [#allocation4], 0
    // Predicated region
    $region2: #{tpu_custom_call.1} parent=1 // pred_check
      _
    $region3: #{tpu_custom_call.1} parent=1 // pred_check_branch
      %9 = sbr.rel (0) target = $region5
    $region4: #{tpu_custom_call.1} parent=1 // pred_region
      %s11 = ssub.s32 256, 256
      %12 = vsyncadd [#allocation3], %s11
      %s14 = sshll.u32 [#allocation2], 4
      %s15 = int_to_ptr.vmem [resolvable:$true] %s14
      %17 = dma.hbm_to_vmem [thread:$0]  %s0, 256, %s15, [#allocation3]
    $region5: #{tpu_custom_call.1} parent=1 // pred_fallthru
      _
    // Predicated region
    $region6: #{tpu_custom_call.1} parent=1 // pred_check
      _
    $region7: #{tpu_custom_call.1} parent=1 // pred_check_branch
      %19 = sbr.rel (0) target = $region9
    $region8: #{tpu_custom_call.1} parent=1 // pred_region
      %20 = dma.done [#allocation3], 256
    $region9: #{tpu_custom_call.1} parent=1 // pred_fallthru
      _
    %v21 = vld [vmem:[#allocation2] sm:$0xff]
    %v22 = vld [vmem:[#allocation2 + $0x8] sm:$0xff]
    %v23 = vxor.u32 %v21, 2147483648
    %v24 = vxor.u32 %v22, 2147483648
    %v25 = vmul.f32 %v23, 1.442695
    %v26 = vpow.pop %v25
    %v27 = vmul.f32 %v24, 1.442695
    %v28 = vpow.pop %v27
    %v29 = vadd.f32 %v26, 1.0
    %v30 = vadd.f32 %v28, 1.0
    %v31 = vrcp.pop %v29
    %v32 = vmul.f32 1.0, %v31
    %v33 = vrcp.pop %v30
    %v34 = vmul.f32 1.0, %v33
    %v35 = vmul.f32 %v32, 3.0
    %v36 = vmul.f32 %v34, 3.0
    %v37 = vadd.f32 %v35, -1.0
    %v38 = vadd.f32 %v36, -1.0
    %39 = vst [vmem:[#allocation5] sm:$0xff] %v37
    %40 = vst [vmem:[#allocation5 + $0x8] sm:$0xff] %v38
    // Predicated region
    $region10: #{tpu_custom_call.1} parent=1 // pred_check
      _
    $region11: #{tpu_custom_call.1} parent=1 // pred_check_branch
      %42 = sbr.rel (0) target = $region13
    $region12: #{tpu_custom_call.1} parent=1 // pred_region
      %s44 = ssub.s32 256, 256
      %45 = vsyncadd [#allocation4], %s44
      %s47 = sshll.u32 [#allocation5], 4
      %s48 = int_to_ptr.vmem [resolvable:$true] %s47
      %50 = dma.vmem_to_hbm [thread:$0]  %s48, 256, %s1, [#allocation4]
    $region13: #{tpu_custom_call.1} parent=1 // pred_fallthru
      _
    // Predicated region
    $region14: #{tpu_custom_call.1} parent=1 // pred_check
      _
    $region15: #{tpu_custom_call.1} parent=1 // pred_check_branch
      %52 = sbr.rel (0) target = $region17
    $region16: #{tpu_custom_call.1} parent=1 // pred_region
      %53 = dma.done [#allocation4], 256
    $region17: #{tpu_custom_call.1} parent=1 // pred_fallthru
      _
    %54 = vsyncpa [#allocation3], 1
    %55 = vsyncpa [#allocation4], 1

</llo_original>
